<compile_context>
chip_gen: v5e
topology: v5e:2x2
jax: 0.10.0
libtpu: 0.0.40
codegen_flags: <defaults>
</compile_context>

<pallas_src>
import math

import jax
import jax.numpy as jnp
from jax.experimental import pallas as pl
from jax.experimental.pallas import tpu as pltpu


def _copy_kernel(x_ref, o_ref):
    # Identity copy of the (already reshaped) view into the output block.
    o_ref[...] = x_ref[...]


def _copy_small(x_view: jax.Array) -> jax.Array:
    # No grid: the whole array is a single VMEM block. Full-array block shapes
    # are exempt from the (8, 128) divisibility rule, so (1, 12) is fine.
    return pl.pallas_call(
        _copy_kernel,
        out_shape=jax.ShapeDtypeStruct(x_view.shape, x_view.dtype),
    )(x_view)


def _copy_large_2d(x2: jax.Array, *, tile_rows: int = 2048) -> jax.Array:
    # Lane-dense streaming copy: (2048 x 512) f32 = 4 MiB blocks. With in+out
    # double-buffered that is ~16 MiB VMEM -- safe on every generation,
    # including v7x (64 MiB physical VMEM). "parallel" lets v7x's two
    # TensorCores split the row range. No padding: Pallas masks the ragged
    # last block's loads/stores, which is safe for a pure copy.
    rows, cols = x2.shape
    grid_rows = pl.cdiv(rows, tile_rows)
    return pl.pallas_call(
        _copy_kernel,
        out_shape=jax.ShapeDtypeStruct((rows, cols), x2.dtype),
        grid_spec=pltpu.PrefetchScalarGridSpec(
            num_scalar_prefetch=0,
            grid=(grid_rows,),
            in_specs=[pl.BlockSpec((tile_rows, cols), lambda i: (i, 0))],
            out_specs=pl.BlockSpec((tile_rows, cols), lambda i: (i, 0)),
        ),
        compiler_params=pltpu.CompilerParams(
            dimension_semantics=("parallel",),
            vmem_limit_bytes=64 << 20,
        ),
    )(x2)


def pallas_reshape(x: jax.Array, target_shape=(1, 12)) -> jax.Array:
    """x.reshape(target_shape) with the output materialized by a Pallas TPU kernel."""
    total = math.prod(target_shape)
    assert x.size == total, f"cannot reshape {x.shape} -> {target_shape}"

    itemsize = jnp.dtype(x.dtype).itemsize
    lane = 512
    small_limit_bytes = 2 << 20  # <= 2 MiB: single block, skip the grid entirely

    if total * itemsize <= small_limit_bytes or total % lane != 0:
        # Fast path (always taken for this module's (1, 12) output).
        # The reshape itself is metadata-only on a contiguous array.
        return _copy_small(jnp.reshape(x, target_shape))

    # Large inputs: stream through a lane-dense 2D slab in multi-MiB blocks,
    # then apply the (metadata-only) reshape to the target shape.
    x2 = jnp.reshape(x, (total // lane, lane))
    out2 = _copy_large_2d(x2)
    return jnp.reshape(out2, target_shape)


if __name__ == "__main__":
    key = jax.random.PRNGKey(0)
    # Matches the Qualcomm test harness for Reshape: a 12-element input
    # reshaped to (1, 12).
    x = jax.random.normal(key, (3, 4), dtype=jnp.float32)

    y = pallas_reshape(x)
    jax.block_until_ready(y)

    y_ref = jnp.reshape(x, (1, 12))
    assert y.shape == (1, 12) and y.dtype == x.dtype
    assert jnp.array_equal(y, y_ref)
    print("KERNEL_OK")
</pallas_src>

<mosaic_0001>
module attributes {stable_mosaic.version = 11 : i64} {
  func.func @_copy_kernel(%arg0: memref<1x12xf32, #tpu.memory_space<vmem>>, %arg1: memref<1x12xf32, #tpu.memory_space<vmem>>) attributes {dimension_semantics = [], scalar_prefetch = 0 : i64, scratch_operands = 0 : i64, tpu.core_type = #tpu.core_type<tc>} {
    %c0 = arith.constant 0 : index
    %c0_0 = arith.constant 0 : index
    %0 = vector.load %arg0[%c0, %c0_0] : memref<1x12xf32, #tpu.memory_space<vmem>>, vector<1x12xf32>
    %c0_1 = arith.constant 0 : index
    %c0_2 = arith.constant 0 : index
    %1 = vector.load %arg1[%c0_1, %c0_2] : memref<1x12xf32, #tpu.memory_space<vmem>>, vector<1x12xf32>
    tpu.vector_store %arg1[%c0_1, %c0_2], %0 {strides = array<i32>} : memref<1x12xf32, #tpu.memory_space<vmem>>, vector<1x12xf32>,
    return
  }
}

</mosaic_0001>

<llo_original>
// kernel: tpu_custom_call.1
$region0: #{tpu_custom_call.1}
  #allocation0 [shape = 'u32[]', space=smem, size = 0x4, offset = 0x4, fixed_abs, tag = 'smem constant byte address 0x4 - core index']
  #allocation1 [shape = 'u32[72,128]{1,0:T(1,128)}', space=vmem, size = 0x9000, scoped, tag = 'internal scratch']
  %s0 = inlined_call_operand.hbm [shape: f32[1,12], index: 0, kind: input, shape index: {}]
  %s1 = inlined_call_operand.hbm [shape: f32[1,12], index: 1, kind: output, shape index: {}]
  %s2 = sld [smem:[#allocation0]]
  $region18: #{tpu_custom_call.1} parent=0
    _
  %s4 = ssub.s32 1, %s2
  %s5 = scalar_select 0, %s4, %s2
  $region1: #{tpu_custom_call.1} parent=0
    #allocation2 [shape = 'u8[512]{0}', space=vmem, size = 0x400, scoped, tag = 'input window, operand 0, single buffered']
    #allocation3 [shape = 's32[1]{0}', space=sflag, size = 0x4, scoped, tag = 'scoped memory for tpu_custom_call.1']
    #allocation4 [shape = 's32[1]{0}', space=sflag, size = 0x4, scoped, tag = 'scoped memory for tpu_custom_call.1']
    #allocation5 [shape = 'u8[512]{0}', space=vmem, size = 0x400, scoped, tag = 'output window, operand 0, single buffered']
    %6 = vsyncpa [#allocation3], 0
    %7 = vsyncpa [#allocation4], 0
    // Predicated region
    $region2: #{tpu_custom_call.1} parent=1 // pred_check
      _
    $region3: #{tpu_custom_call.1} parent=1 // pred_check_branch
      %9 = sbr.rel (0) target = $region5
    $region4: #{tpu_custom_call.1} parent=1 // pred_region
      %11 = vsyncadd [#allocation3], 0
      %s13 = sshll.u32 %s0, 4
      %s14 = int_to_ptr.hbm [resolvable:$true] %s13
      %s15 = sshll.u32 [#allocation2], 4
      %s16 = int_to_ptr.vmem [resolvable:$true] %s15
      %18 = dma.hbm_to_vmem [thread:$0]  %s14, 16, %s16, [#allocation3]
    $region5: #{tpu_custom_call.1} parent=1 // pred_fallthru
      _
    // Predicated region
    $region6: #{tpu_custom_call.1} parent=1 // pred_check
      _
    $region7: #{tpu_custom_call.1} parent=1 // pred_check_branch
      %20 = sbr.rel (0) target = $region9
    $region8: #{tpu_custom_call.1} parent=1 // pred_region
      %22 = dma.done [#allocation3], 16
    $region9: #{tpu_custom_call.1} parent=1 // pred_fallthru
      _
    %v23 = vld [vmem:[#allocation2] sm:$0x1]
    %vm24 = vcmask 90112
    %25 = vst.msk [vmem:[#allocation5] sm:$0x1] %vm24, %v23
    // Predicated region
    $region10: #{tpu_custom_call.1} parent=1 // pred_check
      _
    $region11: #{tpu_custom_call.1} parent=1 // pred_check_branch
      %27 = sbr.rel (0) target = $region13
    $region12: #{tpu_custom_call.1} parent=1 // pred_region
      %29 = vsyncadd [#allocation4], 0
      %s31 = sshll.u32 [#allocation5], 4
      %s32 = int_to_ptr.vmem [resolvable:$true] %s31
      %s33 = sshll.u32 %s1, 4
      %s34 = int_to_ptr.hbm [resolvable:$true] %s33
      %36 = dma.vmem_to_hbm [thread:$0]  %s32, 16, %s34, [#allocation4]
    $region13: #{tpu_custom_call.1} parent=1 // pred_fallthru
      _
    // Predicated region
    $region14: #{tpu_custom_call.1} parent=1 // pred_check
      _
    $region15: #{tpu_custom_call.1} parent=1 // pred_check_branch
      %38 = sbr.rel (0) target = $region17
    $region16: #{tpu_custom_call.1} parent=1 // pred_region
      %40 = dma.done [#allocation4], 16
    $region17: #{tpu_custom_call.1} parent=1 // pred_fallthru
      _
    %41 = vsyncpa [#allocation3], 1
    %42 = vsyncpa [#allocation4], 1

</llo_original>
